<compile_context>
chip_gen: v7x
topology: tpu7x:2x2x1
jax: 0.10.0
libtpu: 0.0.40
codegen_flags: <defaults>
</compile_context>

<pallas_src>
import functools

import jax
import jax.numpy as jnp
from jax.experimental import pallas as pl
from jax.experimental.pallas import tpu as pltpu

C1 = 40            # EfficientNet-B3 conv_stem out channels
F_BACKBONE = 1536  # EfficientNet-B3 classifier.in_features
LANE = 128
BN_EPS = 1e-3


def _round_up(x, m):
    return (x + m - 1) // m * m


def _tf_same_pad(size, k, stride):
    """TF-style SAME padding (extra pad goes to bottom/right)."""
    out = -(-size // stride)
    pad = max((out - 1) * stride + k - size, 0)
    return out, pad // 2, pad - pad // 2


def _im2col_tf_same(x_nhwc, k=3, stride=2):
    """im2col for a k x k stride-s conv with TF SAME padding.

    Returns patches [N, Ho*Wo, k*k*C] with the last (lane) dim ordered
    (kh, kw, c) -- exactly the layout the kernel BlockSpec tiles.
    """
    n, h, w, c = x_nhwc.shape
    ho, pt, pb = _tf_same_pad(h, k, stride)
    wo, pleft, pright = _tf_same_pad(w, k, stride)
    xp = jnp.pad(x_nhwc, ((0, 0), (pt, pb), (pleft, pright), (0, 0)))
    cols = []
    for kh in range(k):
        for kw in range(k):
            cols.append(
                xp[:, kh:kh + stride * (ho - 1) + 1:stride,
                   kw:kw + stride * (wo - 1) + 1:stride, :])
    patches = jnp.concatenate(cols, axis=-1)
    return patches.reshape(n, ho * wo, k * k * c), ho, wo


# ---------------------------------------------------------------------------
# Pallas kernels
# ---------------------------------------------------------------------------
def _stem_kernel(patches_ref, w1_ref, b1_ref, out_ref, acc_ref, *,
                 valid_rows, tile_rows, inv_count):
    """conv_stem (BN folded) + SiLU + global-avg-pool partial sums."""
    s = pl.program_id(1)
    n_s = pl.num_programs(1)

    @pl.when(s == 0)
    def _init():
        acc_ref[...] = jnp.zeros_like(acc_ref)

    p = patches_ref[0]                                           # (TS, K) bf16
    y = jnp.dot(p, w1_ref[...], preferred_element_type=jnp.float32)
    y = y + b1_ref[...]                                          # folded BN shift
    y = y * jax.nn.sigmoid(y)                                    # SiLU (f32, VPU/EUP)

    @pl.when(s < n_s - 1)
    def _steady():
        # Pure VPU accumulation into (8, C1p) partial sums; no masking, no XLU.
        acc_ref[...] += jnp.sum(y.reshape(tile_rows // 8, 8, -1), axis=0)

    @pl.when(s == n_s - 1)
    def _finalize():
        # Only the last tile can contain zero-padded im2col rows -> mask here.
        row = s * tile_rows + jax.lax.broadcasted_iota(
            jnp.int32, (tile_rows, 1), 0)
        ym = jnp.where(row < valid_rows, y, 0.0)
        acc_ref[...] += jnp.sum(ym.reshape(tile_rows // 8, 8, -1), axis=0)
        out_ref[0] = acc_ref[...] * inv_count                    # (8, C1p), lane dense


def _head_kernel(f_ref, w2_ref, wc_ref, bc_ref, wh_ref, bh_ref, out_ref):
    """pool-finish + 40->1536 proxy + classifier Linear -> ReLU -> lin_head."""
    pooled = jnp.sum(f_ref[...], axis=1)                         # (tn, C1p) f32
    feats = jnp.dot(pooled.astype(jnp.bfloat16), w2_ref[...],
                    preferred_element_type=jnp.float32)          # (tn, 1536)
    h = jnp.dot(feats.astype(jnp.bfloat16), wc_ref[...],
                preferred_element_type=jnp.float32) + bc_ref[...]
    h = jnp.maximum(h, 0.0)                                      # ReLU in f32
    o = jnp.dot(h.astype(jnp.bfloat16), wh_ref[...],
                preferred_element_type=jnp.float32) + bh_ref[...]
    out_ref[...] = o


# ---------------------------------------------------------------------------
# Parameters
# ---------------------------------------------------------------------------
def init_lmm_params(key, input_channels, output_channels):
    ks = jax.random.split(key, 10)
    fan_in = 3 * 3 * input_channels
    return dict(
        w_conv=jax.random.normal(ks[0], (C1, input_channels, 3, 3),
                                 jnp.float32) * (fan_in ** -0.5),
        gamma=1.0 + 0.1 * jax.random.normal(ks[1], (C1,), jnp.float32),
        beta=0.1 * jax.random.normal(ks[2], (C1,), jnp.float32),
        mean=0.1 * jax.random.normal(ks[3], (C1,), jnp.float32),
        var=jax.random.uniform(ks[4], (C1,), jnp.float32, 0.5, 1.5),
        w_proxy=jax.random.normal(ks[5], (C1, F_BACKBONE),
                                  jnp.float32) * (C1 ** -0.5),
        wc=jax.random.normal(ks[6], (F_BACKBONE, F_BACKBONE),
                             jnp.float32) * (F_BACKBONE ** -0.5),
        bc=0.02 * jax.random.normal(ks[7], (F_BACKBONE,), jnp.float32),
        wh=jax.random.normal(ks[8], (F_BACKBONE, output_channels),
                             jnp.float32) * (F_BACKBONE ** -0.5),
        bh=0.02 * jax.random.normal(ks[9], (output_channels,), jnp.float32),
    )


def prep_kernel_params(params, input_channels, output_channels):
    """Fold BN into the stem weights; pad only lane dims that need it."""
    scale = params['gamma'] / jnp.sqrt(params['var'] + BN_EPS)
    w_fold = params['w_conv'] * scale[:, None, None, None]
    b_fold = params['beta'] - params['mean'] * scale

    k_dim = 3 * 3 * input_channels          # un-padded: full-dim tiled in HBM
    c1_pad = _round_up(C1, LANE)
    out_pad = _round_up(output_channels, LANE)

    # (O, I, kh, kw) -> (kh, kw, I, O) -> (K, C1): matches im2col column order.
    w1 = jnp.transpose(w_fold, (2, 3, 1, 0)).reshape(k_dim, C1)
    w1 = jnp.pad(w1, ((0, 0), (0, c1_pad - C1))).astype(jnp.bfloat16)
    b1 = jnp.pad(b_fold, (0, c1_pad - C1)).reshape(1, c1_pad).astype(jnp.float32)
    w2 = jnp.pad(params['w_proxy'],
                 ((0, c1_pad - C1), (0, 0))).astype(jnp.bfloat16)
    wc = params['wc'].astype(jnp.bfloat16)
    bc = params['bc'].reshape(1, F_BACKBONE).astype(jnp.float32)
    wh = jnp.pad(params['wh'],
                 ((0, 0), (0, out_pad - output_channels))).astype(jnp.bfloat16)
    bh = jnp.pad(params['bh'],
                 (0, out_pad - output_channels)).reshape(1, out_pad).astype(jnp.float32)
    return dict(w1=w1, b1=b1, w2=w2, wc=wc, bc=bc, wh=wh, bh=bh,
                k_dim=k_dim, c1_pad=c1_pad, out_pad=out_pad)


# ---------------------------------------------------------------------------
# Forward
# ---------------------------------------------------------------------------
def lmm_forward(x_nchw, kp, output_channels, *, max_tile_rows=1024):
    n = x_nchw.shape[0]
    x = jnp.transpose(x_nchw, (0, 2, 3, 1)).astype(jnp.float32)      # NHWC
    patches, ho, wo = _im2col_tf_same(x)
    s_dim = ho * wo
    ts = max_tile_rows if s_dim >= max_tile_rows else _round_up(s_dim, 8)
    s_pad = _round_up(s_dim, ts)
    # Pad only the spatial (row) dim; K stays un-padded in HBM.
    patches = jnp.pad(
        patches, ((0, 0), (0, s_pad - s_dim), (0, 0))).astype(jnp.bfloat16)

    k_dim, c1_pad, out_pad = kp['k_dim'], kp['c1_pad'], kp['out_pad']

    pooled = pl.pallas_call(
        functools.partial(_stem_kernel, valid_rows=s_dim, tile_rows=ts,
                          inv_count=1.0 / float(s_dim)),
        out_shape=jax.ShapeDtypeStruct((n, 8, c1_pad), jnp.float32),
        grid_spec=pltpu.PrefetchScalarGridSpec(
            num_scalar_prefetch=0,
            grid=(n, s_pad // ts),
            in_specs=[
                pl.BlockSpec((1, ts, k_dim), lambda b, s: (b, s, 0)),
                pl.BlockSpec((k_dim, c1_pad), lambda b, s: (0, 0)),
                pl.BlockSpec((1, c1_pad), lambda b, s: (0, 0)),
            ],
            out_specs=pl.BlockSpec((1, 8, c1_pad), lambda b, s: (b, 0, 0)),
            scratch_shapes=[pltpu.VMEM((8, c1_pad), jnp.float32)],
        ),
        compiler_params=pltpu.CompilerParams(
            dimension_semantics=("parallel", "arbitrary"),
            vmem_limit_bytes=16 * 1024 * 1024,
        ),
    )(patches, kp['w1'], kp['b1'])

    tn = 8
    n_pad = _round_up(n, tn)
    pooled = jnp.pad(pooled, ((0, n_pad - n), (0, 0), (0, 0)))

    out = pl.pallas_call(
        _head_kernel,
        out_shape=jax.ShapeDtypeStruct((n_pad, out_pad), jnp.float32),
        grid_spec=pltpu.PrefetchScalarGridSpec(
            num_scalar_prefetch=0,
            grid=(n_pad // tn,),
            in_specs=[
                pl.BlockSpec((tn, 8, c1_pad), lambda b: (b, 0, 0)),
                pl.BlockSpec((c1_pad, F_BACKBONE), lambda b: (0, 0)),
                pl.BlockSpec((F_BACKBONE, F_BACKBONE), lambda b: (0, 0)),
                pl.BlockSpec((1, F_BACKBONE), lambda b: (0, 0)),
                pl.BlockSpec((F_BACKBONE, out_pad), lambda b: (0, 0)),
                pl.BlockSpec((1, out_pad), lambda b: (0, 0)),
            ],
            out_specs=pl.BlockSpec((tn, out_pad), lambda b: (b, 0)),
        ),
        compiler_params=pltpu.CompilerParams(
            dimension_semantics=("parallel",),
            vmem_limit_bytes=24 * 1024 * 1024,
        ),
    )(pooled, kp['w2'], kp['wc'], kp['bc'], kp['wh'], kp['bh'])

    return out[:n, :output_channels]


# ---------------------------------------------------------------------------
# Pure-JAX reference (same math, f32) for a sanity check
# ---------------------------------------------------------------------------
def lmm_reference(x_nchw, params):
    x = jnp.transpose(x_nchw, (0, 2, 3, 1)).astype(jnp.float32)
    n, h, w, _ = x.shape
    ho, pt, pb = _tf_same_pad(h, 3, 2)
    wo, pleft, pright = _tf_same_pad(w, 3, 2)
    scale = params['gamma'] / jnp.sqrt(params['var'] + BN_EPS)
    w_fold = params['w_conv'] * scale[:, None, None, None]
    b_fold = params['beta'] - params['mean'] * scale
    w_hwio = jnp.transpose(w_fold, (2, 3, 1, 0))
    y = jax.lax.conv_general_dilated(
        x, w_hwio, window_strides=(2, 2),
        padding=((pt, pb), (pleft, pright)),
        dimension_numbers=('NHWC', 'HWIO', 'NHWC'))
    y = y + b_fold
    y = y * jax.nn.sigmoid(y)
    pooled = jnp.mean(y.reshape(n, ho * wo, C1), axis=1)
    feats = pooled @ params['w_proxy']
    h1 = jnp.maximum(feats @ params['wc'] + params['bc'], 0.0)
    return h1 @ params['wh'] + params['bh']


if __name__ == "__main__":
    input_channels, output_channels = 4, 5
    batch, height, width = 2, 16, 16

    key = jax.random.PRNGKey(0)
    pkey, xkey = jax.random.split(key)
    params = init_lmm_params(pkey, input_channels, output_channels)
    kp = prep_kernel_params(params, input_channels, output_channels)
    x = jax.random.normal(xkey, (batch, input_channels, height, width),
                          jnp.float32)

    out = lmm_forward(x, kp, output_channels)
    out = jax.block_until_ready(out)

    ref = lmm_reference(x, params)
    assert out.shape == (batch, output_channels)
    max_err = float(jnp.max(jnp.abs(out - ref)))
    assert max_err < 0.1 * (float(jnp.max(jnp.abs(ref))) + 1.0), max_err

    print("KERNEL_OK")
</pallas_src>

<mosaic_0001>
module attributes {stable_mosaic.version = 11 : i64} {
  func.func @_stem_kernel(%arg0: i32, %arg1: i32, %arg2: memref<1x64x36xbf16, #tpu.memory_space<vmem>>, %arg3: memref<36x128xbf16, #tpu.memory_space<vmem>>, %arg4: memref<1x128xf32, #tpu.memory_space<vmem>>, %arg5: memref<1x8x128xf32, #tpu.memory_space<vmem>>, %arg6: memref<8x128xf32, #tpu.memory_space<vmem>>) attributes {dimension_semantics = [#tpu.dimension_semantics<parallel>, #tpu.dimension_semantics<arbitrary>], iteration_bounds = array<i64: 2, 1>, scalar_prefetch = 0 : i64, scratch_operands = 1 : i64, tpu.core_type = #tpu.core_type<tc>, window_params = [{transform_indices = @transform_0, window_bounds = array<i64: 1, 64, 36>}, {pipeline_mode = #tpu.pipeline_mode<synchronous>, transform_indices = @transform_1, window_bounds = array<i64: 36, 128>}, {pipeline_mode = #tpu.pipeline_mode<synchronous>, transform_indices = @transform_2, window_bounds = array<i64: 1, 128>}, {transform_indices = @transform_3, window_bounds = array<i64: 1, 8, 128>}]} {
    %c0_i32 = arith.constant 0 : i32
    %0 = arith.cmpi eq, %arg1, %c0_i32 : i32
    %1 = arith.extui %0 : i1 to i32
    %c0_i32_0 = arith.constant 0 : i32
    %2 = arith.cmpi ne, %1, %c0_i32_0 : i32
    scf.if %2 {
      %cst_12 = arith.constant 0.000000e+00 : f32
      %22 = vector.broadcast %cst_12 : f32 to vector<8x128xf32>
      %c0_13 = arith.constant 0 : index
      %c0_14 = arith.constant 0 : index
      %23 = vector.load %arg6[%c0_13, %c0_14] : memref<8x128xf32, #tpu.memory_space<vmem>>, vector<8x128xf32>
      tpu.vector_store %arg6[%c0_13, %c0_14], %22 {strides = array<i32>} : memref<8x128xf32, #tpu.memory_space<vmem>>, vector<8x128xf32>,
    } else {
    }
    %c0 = arith.constant 0 : index
    %c0_1 = arith.constant 0 : index
    %c0_2 = arith.constant 0 : index
    %3 = vector.load %arg2[%c0, %c0_1, %c0_2] : memref<1x64x36xbf16, #tpu.memory_space<vmem>>, vector<1x64x36xbf16>
    %4 = vector.shape_cast %3 : vector<1x64x36xbf16> to vector<64x36xbf16>
    %c0_3 = arith.constant 0 : index
    %c0_4 = arith.constant 0 : index
    %5 = vector.load %arg3[%c0_3, %c0_4] : memref<36x128xbf16, #tpu.memory_space<vmem>>, vector<36x128xbf16>
    %cst = arith.constant dense<0.000000e+00> : vector<64x128xf32>
    %6 = tpu.matmul %4, %5, %cst {dimension_numbers = #tpu.dot_dimension_numbers<[1], [0], [0], [1], [0, 0, 1, 1], [], []>} : vector<64x36xbf16>, vector<36x128xbf16>, vector<64x128xf32> -> vector<64x128xf32>
    %c0_5 = arith.constant 0 : index
    %c0_6 = arith.constant 0 : index
    %7 = vector.load %arg4[%c0_5, %c0_6] : memref<1x128xf32, #tpu.memory_space<vmem>>, vector<1x128xf32>
    %8 = vector.broadcast %7 : vector<1x128xf32> to vector<64x128xf32>
    %9 = arith.addf %6, %8 : vector<64x128xf32>
    %10 = arith.negf %9 : vector<64x128xf32>
    %11 = math.exp %10 : vector<64x128xf32>
    %cst_7 = arith.constant 1.000000e+00 : f32
    %12 = vector.broadcast %cst_7 : f32 to vector<64x128xf32>
    %13 = arith.addf %12, %11 : vector<64x128xf32>
    %14 = arith.divf %12, %13 : vector<64x128xf32>
    %15 = arith.mulf %9, %14 : vector<64x128xf32>
    %c0_i32_8 = arith.constant 0 : i32
    %16 = arith.cmpi slt, %arg1, %c0_i32_8 : i32
    %17 = arith.extui %16 : i1 to i32
    %c0_i32_9 = arith.constant 0 : i32
    %18 = arith.cmpi ne, %17, %c0_i32_9 : i32
    scf.if %18 {
      %c0_12 = arith.constant 0 : index
      %c0_13 = arith.constant 0 : index
      %22 = vector.load %arg6[%c0_12, %c0_13] : memref<8x128xf32, #tpu.memory_space<vmem>>, vector<8x128xf32>
      %23 = vector.shape_cast %15 : vector<64x128xf32> to vector<8x8x128xf32>
      %cst_14 = arith.constant dense<0.000000e+00> : vector<8x128xf32>
      %24 = vector.multi_reduction <add>, %23, %cst_14 [0] : vector<8x8x128xf32> to vector<8x128xf32>
      %25 = arith.addf %22, %24 : vector<8x128xf32>
      %c0_15 = arith.constant 0 : index
      %c0_16 = arith.constant 0 : index
      %26 = vector.load %arg6[%c0_15, %c0_16] : memref<8x128xf32, #tpu.memory_space<vmem>>, vector<8x128xf32>
      tpu.vector_store %arg6[%c0_15, %c0_16], %25 {strides = array<i32>} : memref<8x128xf32, #tpu.memory_space<vmem>>, vector<8x128xf32>,
    } else {
    }
    %c0_i32_10 = arith.constant 0 : i32
    %19 = arith.cmpi eq, %arg1, %c0_i32_10 : i32
    %20 = arith.extui %19 : i1 to i32
    %c0_i32_11 = arith.constant 0 : i32
    %21 = arith.cmpi ne, %20, %c0_i32_11 : i32
    scf.if %21 {
      %c64_i32 = arith.constant 64 : i32
      %22 = arith.muli %arg1, %c64_i32 : i32
      %23 = tpu.iota {dimensions = array<i32: 0>} : vector<64x1xi32>
      %24 = vector.broadcast %22 : i32 to vector<64x1xi32>
      %25 = arith.addi %24, %23 : vector<64x1xi32>
      %c64_i32_12 = arith.constant 64 : i32
      %26 = vector.broadcast %c64_i32_12 : i32 to vector<64x1xi32>
      %27 = arith.cmpi slt, %25, %26 : vector<64x1xi32>
      %cst_13 = arith.constant 0.000000e+00 : f32
      %28 = vector.shape_cast %27 : vector<64x1xi1> to vector<64x1xi1>
      %29 = vector.broadcast %28 : vector<64x1xi1> to vector<64x128xi1>
      %30 = vector.broadcast %cst_13 : f32 to vector<64x128xf32>
      %31 = arith.select %29, %15, %30 : vector<64x128xi1>, vector<64x128xf32>
      %c0_14 = arith.constant 0 : index
      %c0_15 = arith.constant 0 : index
      %32 = vector.load %arg6[%c0_14, %c0_15] : memref<8x128xf32, #tpu.memory_space<vmem>>, vector<8x128xf32>
      %33 = vector.shape_cast %31 : vector<64x128xf32> to vector<8x8x128xf32>
      %cst_16 = arith.constant dense<0.000000e+00> : vector<8x128xf32>
      %34 = vector.multi_reduction <add>, %33, %cst_16 [0] : vector<8x8x128xf32> to vector<8x128xf32>
      %35 = arith.addf %32, %34 : vector<8x128xf32>
      %c0_17 = arith.constant 0 : index
      %c0_18 = arith.constant 0 : index
      %36 = vector.load %arg6[%c0_17, %c0_18] : memref<8x128xf32, #tpu.memory_space<vmem>>, vector<8x128xf32>
      tpu.vector_store %arg6[%c0_17, %c0_18], %35 {strides = array<i32>} : memref<8x128xf32, #tpu.memory_space<vmem>>, vector<8x128xf32>,
      %c0_19 = arith.constant 0 : index
      %c0_20 = arith.constant 0 : index
      %37 = vector.load %arg6[%c0_19, %c0_20] : memref<8x128xf32, #tpu.memory_space<vmem>>, vector<8x128xf32>
      %cst_21 = arith.constant 1.562500e-02 : f32
      %38 = vector.broadcast %cst_21 : f32 to vector<8x128xf32>
      %39 = arith.mulf %37, %38 : vector<8x128xf32>
      %c0_22 = arith.constant 0 : index
      %c0_23 = arith.constant 0 : index
      %c0_24 = arith.constant 0 : index
      %40 = vector.load %arg5[%c0_22, %c0_23, %c0_24] : memref<1x8x128xf32, #tpu.memory_space<vmem>>, vector<1x8x128xf32>
      %41 = vector.shape_cast %40 : vector<1x8x128xf32> to vector<8x128xf32>
      %42 = vector.shape_cast %39 : vector<8x128xf32> to vector<1x8x128xf32>
      tpu.vector_store %arg5[%c0_22, %c0_23, %c0_24], %42 {strides = array<i32>} : memref<1x8x128xf32, #tpu.memory_space<vmem>>, vector<1x8x128xf32>,
    } else {
    }
    return
  }
  func.func @transform_0(%arg0: i32, %arg1: i32) -> (i32, i32, i32) {
    %c0_i32 = arith.constant 0 : i32
    %c0_i32_0 = arith.constant 0 : i32
    return %arg0, %arg1, %c0_i32 : i32, i32, i32
  }
  func.func @transform_1(%arg0: i32, %arg1: i32) -> (i32, i32) {
    %c0_i32 = arith.constant 0 : i32
    %c0_i32_0 = arith.constant 0 : i32
    %c0_i32_1 = arith.constant 0 : i32
    return %c0_i32, %c0_i32_0 : i32, i32
  }
  func.func @transform_2(%arg0: i32, %arg1: i32) -> (i32, i32) {
    %c0_i32 = arith.constant 0 : i32
    %c0_i32_0 = arith.constant 0 : i32
    %c0_i32_1 = arith.constant 0 : i32
    return %c0_i32, %c0_i32_0 : i32, i32
  }
  func.func @transform_3(%arg0: i32, %arg1: i32) -> (i32, i32, i32) {
    %c0_i32 = arith.constant 0 : i32
    %c0_i32_0 = arith.constant 0 : i32
    %c0_i32_1 = arith.constant 0 : i32
    return %arg0, %c0_i32, %c0_i32_0 : i32, i32, i32
  }
}

</mosaic_0001>

<llo_original>
// kernel: tpu_custom_call.1
$region0: #{tpu_custom_call.1}
  #allocation0 [shape = 'u32[]', space=smem, size = 0x4, offset = 0x4, fixed_abs, tag = 'smem constant byte address 0x4 - core index']
  #allocation1 [shape = 'u32[144,128]{1,0:T(1,128)}', space=vmem, size = 0x12000, scoped, tag = 'internal scratch']
  #allocation2 [shape = 'f32[8,128]{1,0:T(8,128)}', space=vmem, size = 0x1000, scoped, tag = 'scratch operand']
  %s0 = inlined_call_operand.vmem [shape: bf16[2,64,36], index: 0, kind: input, shape index: {}]
  %s1 = inlined_call_operand.vmem [shape: bf16[36,128], index: 1, kind: input, shape index: {}]
  %s2 = inlined_call_operand.vmem [shape: f32[1,128], index: 2, kind: input, shape index: {}]
  %s3 = inlined_call_operand.hbm [shape: f32[2,8,128], index: 3, kind: output, shape index: {}]
  %s4 = sld [smem:[#allocation0]]
  $region57: #{tpu_custom_call.1} parent=0
    _
  %s6 = ssub.s32 1, %s4
  %s7 = scalar_select 0, %s6, %s4
  $region1: #{tpu_custom_call.1} parent=0
    #allocation3 [shape = 'u8[8192]{0}', space=vmem, size = 0x2000, scoped, tag = 'output window, operand 0']
    #allocation4 [shape = 's32[2]{0}', space=sflag, size = 0x8, scoped, tag = 'scoped memory for tpu_custom_call.1']
    %8 = vsyncpa [#allocation4], 0
    %s9 = scalar_lea.sflag [#allocation4], 1
    %10 = vsyncpa %s9, 0
    loop: start=0, step=1, limit=4
    $region2: #{tpu_custom_call.1} parent=1 // loop_pre_header
      _
    $region3: #{tpu_custom_call.1} parent=1 // loop_header
      %s12 = sphi 0, %s16
      %p13 = scmp.ge.s32.totalorder %s12, 4
      %s19 = sphi 0, %s31
      %s20 = sphi 0, %s27
      %s21 = sphi 0, %s19
      %s22 = sphi 0, %s20
      %s23 = sphi 0, %s21
      %s24 = sphi 0, %s22
      %s36 = sphi 0, %s38
      %s39 = sphi 0, %s36
      %s40 = sphi 0, %s39
      %s56 = sphi 0, %s40
      %s60 = sphi 0, %s60
      %s62 = sphi 0, %s60
      %s63 = sphi 0, %s62
      %s77 = sphi 0, %s63
      %s81 = sphi 0, %s81
      %s83 = sphi 0, %s81
      %s84 = sphi 0, %s83
      %s98 = sphi 0, %s84
      %s104 = sphi 0, %s106
      %s107 = sphi 0, %s104
      %s108 = sphi 0, %s107
      %s124 = sphi 0, %s108
    $region4: #{tpu_custom_call.1} parent=1 // loop_header_branch
      %15 = sbr.rel (%p13) target = $region8
    $region5: #{tpu_custom_call.1} parent=1 // loop_body
      %s17 = ssub.s32 %s12, 1
      %s18 = ssub.s32 %s12, 2
      %s25 = sadd.s32 1, %s20
      %p26 = scmp.ge.s32.totalorder %s25, 1
      %s27 = scalar_select %p26, 0, %s25
      %s28 = sadd.s32 1, %s19
      %s29 = scalar_select %p26, %s28, %s19
      %p30 = scmp.ge.s32.totalorder %s29, 2
      %s31 = scalar_select %p30, 0, %s29
      %s32 = ssub.s32 %s19, %s31
      %s33 = ssub.s32 %s20, %s27
      %s34 = sor.u32 %s32, %s33
      %p35 = scmp.eq.s32.totalorder %s34, 0
      %s37 = sadd.s32 %s36, 1
      %s38 = scalar_select %p35, %s36, %s37
      %p41 = pneg %p35
      %p42 = scmp.eq.s32.totalorder %s12, 1
      %p43 = por %p41, %p42
      %p44 = scmp.ne.s32.totalorder %s36, %s39
      %p45 = scmp.eq.s32.totalorder %s12, 0
      %p46 = por %p44, %p45
      %p47 = scmp.ne.s32.totalorder %s36, %s39
      %p48 = scmp.eq.s32.totalorder %s17, 1
      %p49 = por %p47, %p48
      %p50 = scmp.ne.s32.totalorder %s39, %s40
      %p51 = scmp.eq.s32.totalorder %s17, 0
      %p52 = por %p50, %p51
      %p53 = scmp.ne.s32.totalorder %s39, %s40
      %p54 = scmp.eq.s32.totalorder %s18, 1
      %p55 = por %p53, %p54
      %p57 = scmp.ne.s32.totalorder %s40, %s56
      %p58 = scmp.eq.s32.totalorder %s18, 0
      %p59 = por %p57, %p58
      %s61 = sadd.s32 %s60, 1
      %p64 = scmp.eq.s32.totalorder %s12, 1
      %p65 = scmp.ne.s32.totalorder %s60, %s62
      %p66 = scmp.eq.s32.totalorder %s12, 0
      %p67 = por %p65, %p66
      %p68 = scmp.ne.s32.totalorder %s60, %s62
      %p69 = scmp.eq.s32.totalorder %s17, 1
      %p70 = por %p68, %p69
      %p71 = scmp.ne.s32.totalorder %s62, %s63
      %p72 = scmp.eq.s32.totalorder %s17, 0
      %p73 = por %p71, %p72
      %p74 = scmp.ne.s32.totalorder %s62, %s63
      %p75 = scmp.eq.s32.totalorder %s18, 1
      %p76 = por %p74, %p75
      %p78 = scmp.ne.s32.totalorder %s63, %s77
      %p79 = scmp.eq.s32.totalorder %s18, 0
      %p80 = por %p78, %p79
      %s82 = sadd.s32 %s81, 1
      %p85 = scmp.eq.s32.totalorder %s12, 1
      %p86 = scmp.ne.s32.totalorder %s81, %s83
      %p87 = scmp.eq.s32.totalorder %s12, 0
      %p88 = por %p86, %p87
      %p89 = scmp.ne.s32.totalorder %s81, %s83
      %p90 = scmp.eq.s32.totalorder %s17, 1
      %p91 = por %p89, %p90
      %p92 = scmp.ne.s32.totalorder %s83, %s84
      %p93 = scmp.eq.s32.totalorder %s17, 0
      %p94 = por %p92, %p93
      %p95 = scmp.ne.s32.totalorder %s83, %s84
      %p96 = scmp.eq.s32.totalorder %s18, 1
      %p97 = por %p95, %p96
      %p99 = scmp.ne.s32.totalorder %s84, %s98
      %p100 = scmp.eq.s32.totalorder %s18, 0
      %p101 = por %p99, %p100
      %s102 = ssub.s32 %s19, %s31
      %p103 = scmp.eq.s32.totalorder %s102, 0
      %s105 = sadd.s32 %s104, 1
      %s106 = scalar_select %p103, %s104, %s105
      %p109 = pneg %p103
      %p110 = scmp.eq.s32.totalorder %s12, 1
      %p111 = por %p109, %p110
      %p112 = scmp.ne.s32.totalorder %s104, %s107
      %p113 = scmp.eq.s32.totalorder %s12, 0
      %p114 = por %p112, %p113
      %p115 = scmp.ne.s32.totalorder %s104, %s107
      %p116 = scmp.eq.s32.totalorder %s17, 1
      %p117 = por %p115, %p116
      %p118 = scmp.ne.s32.totalorder %s107, %s108
      %p119 = scmp.eq.s32.totalorder %s17, 0
      %p120 = por %p118, %p119
      %p121 = scmp.ne.s32.totalorder %s107, %s108
      %p122 = scmp.eq.s32.totalorder %s18, 1
      %p123 = por %p121, %p122
      %p125 = scmp.ne.s32.totalorder %s108, %s124
      %p126 = scmp.eq.s32.totalorder %s18, 0
      %p127 = por %p125, %p126
      %p128 = scmp.le.s32.totalorder 1, %s12
      %p129 = scmp.lt.s32.totalorder %s12, 3
      %p130 = pnand %p128, %p129
      %p131 = pneg %p130
      // Predicated region
      $region9: #{tpu_custom_call.1} parent=5 // pred_check
        _
      $region10: #{tpu_custom_call.1} parent=5 // pred_check_branch
        %133 = sbr.rel (%p130) target = $region12
      $region11: #{tpu_custom_call.1} parent=5 // pred_region
        %s134 = ssub.s32 %s12, 1
        // Predicated region
        $region13: #{tpu_custom_call.1} parent=11 // pred_check
          %p135 = pneg %p73
        $region14: #{tpu_custom_call.1} parent=11 // pred_check_branch
          %137 = sbr.rel (%p135) target = $region16
        $region15: #{tpu_custom_call.1} parent=11 // pred_region
          _
        $region16: #{tpu_custom_call.1} parent=11 // pred_fallthru
          _
        // Predicated region
        $region17: #{tpu_custom_call.1} parent=11 // pred_check
          %p138 = pneg %p94
        $region18: #{tpu_custom_call.1} parent=11 // pred_check_branch
          %140 = sbr.rel (%p138) target = $region20
        $region19: #{tpu_custom_call.1} parent=11 // pred_region
          _
        $region20: #{tpu_custom_call.1} parent=11 // pred_fallthru
          _
      $region12: #{tpu_custom_call.1} parent=5 // pred_fallthru
        _
      %p141 = scmp.lt.s32.totalorder %s12, 2
      // Predicated region
      $region21: #{tpu_custom_call.1} parent=5 // pred_check
        %p142 = pneg %p141
      $region22: #{tpu_custom_call.1} parent=5 // pred_check_branch
        %144 = sbr.rel (%p142) target = $region24
      $region23: #{tpu_custom_call.1} parent=5 // pred_region
        // Predicated region
        $region25: #{tpu_custom_call.1} parent=23 // pred_check
          %p145 = pneg %p46
        $region26: #{tpu_custom_call.1} parent=23 // pred_check_branch
          %147 = sbr.rel (%p145) target = $region28
        $region27: #{tpu_custom_call.1} parent=23 // pred_region
          %s148 = smul.u32 8, %s20
          %p149 = scmp.lt.s32.totalorder %s19, 1
          %s150 = scalar_select %p149, %s19, 1
          %p151 = scmp.lt.s32.totalorder %s148, 7
          %s152 = scalar_select %p151, %s148, 7
          %s153 = smul.addr %s150, 8
          %s154 = sadd.s32 %s152, %s153
          %s155 = smul.addr %s154, 4
          %s156 = scalar_lea.vmem %s0, %s155
          %s157 = smul.u32 8, %s20
        $region28: #{tpu_custom_call.1} parent=23 // pred_fallthru
          _
      $region24: #{tpu_custom_call.1} parent=5 // pred_fallthru
        _
      %p158 = scmp.le.s32.totalorder 1, %s12
      %p159 = scmp.lt.s32.totalorder %s12, 3
      %p160 = pnand %p158, %p159
      %p161 = pneg %p160
      // Predicated region
      $region29: #{tpu_custom_call.1} parent=5 // pred_check
        _
      $region30: #{tpu_custom_call.1} parent=5 // pred_check_branch
        %163 = sbr.rel (%p160) target = $region32
      $region31: #{tpu_custom_call.1} parent=5 // pred_region
        %s164 = ssub.s32 %s12, 1
        %s165 = smul.u32 8, %s22
        %p166 = scmp.lt.s32.totalorder %s21, 1
        %s167 = scalar_select %p166, %s21, 1
        %p168 = scmp.lt.s32.totalorder %s165, 7
        %s169 = scalar_select %p168, %s165, 7
        %s170 = smul.addr %s167, 8
        %s171 = sadd.s32 %s169, %s170
        %s172 = smul.addr %s171, 4
        %s173 = scalar_lea.vmem %s0, %s172
        %p174 = pneg %p52
        %p175 = pneg %p49
        %p176 = pneg %p73
        %p177 = pneg %p70
        %p178 = pneg %p94
        %p179 = pneg %p91
        %p180 = pneg %p120
        %p181 = pneg %p117
        %s182 = sand.u32 %s107, 1
        %s183 = scalar_lea.sflag [#allocation4], %s182
        %s184 = sand.u32 %s107, 1
        %s185 = smul.addr %s184, 8
        %s186 = scalar_lea.vmem [#allocation3], %s185
        %s187 = smul.u32 8, %s22
        %p188 = scmp.lt.s32.totalorder %s21, 1
        %s189 = scalar_select %p188, %s21, 1
        %p190 = scmp.lt.s32.totalorder %s187, 7
        %s191 = scalar_select %p190, %s187, 7
        %s192 = smul.addr %s189, 8
        %s193 = sadd.s32 %s191, %s192
        %s194 = smul.addr %s193, 4
        %s195 = scalar_lea.vmem %s0, %s194
        %s196 = smul.u32 8, %s22
        %p198 = scmp.eq.s32.totalorder %s22, 0
        // Predicated region
        $region33: #{tpu_custom_call.1} parent=31 // pred_check
          %p199 = pneg %p198
        $region34: #{tpu_custom_call.1} parent=31 // pred_check_branch
          %201 = sbr.rel (%p199) target = $region36
        $region35: #{tpu_custom_call.1} parent=31 // pred_region
          %202 = vst [vmem:[#allocation2] sm:$0xff] 0.0
        $region36: #{tpu_custom_call.1} parent=31 // pred_fallthru
          _
        %v203 = vld [vmem:[%s195] sm:$0xf]
        %v204 = vld [vmem:[%s195 + $0x4] sm:$0xf]
        %v205 = vld [vmem:[%s195 + $0x8] sm:$0xf]
        %v206 = vld [vmem:[%s195 + $0xc] sm:$0xf]
        %v207 = vld [vmem:[%s195 + $0x10] sm:$0xf]
        %v208 = vld [vmem:[%s195 + $0x14] sm:$0xf]
        %v209 = vld [vmem:[%s195 + $0x18] sm:$0xf]
        %v210 = vld [vmem:[%s195 + $0x1c] sm:$0xf]
        %v211 = vld [vmem:[%s1] sm:$0xf]
        %v212 = vld [vmem:[%s1 + $0x4] sm:$0xf]
        %v213 = vld [vmem:[%s1 + $0x8] sm:$0xf]
        %v214 = vld [vmem:[%s1 + $0xc] sm:$0xf]
        %v215 = vld [vmem:[%s1 + $0x10] sm:$0x3]
        %v216 = vld [vmem:[%s2] sm:$0x1]
        %v218 = vlaneseq
        %v219 = vshrl.u32 %v218, 7
        %v220 = vsub.s32 0, %v219
        %v221 = vrot.slane %v216, %v220
        %v231 = vunpack.c.l.b16 %v203
        %v232 = vunpack.c.l.b16 %v204
        %v233 = vunpack.c.l.b16 %v205
        %v234 = vunpack.c.l.b16 %v206
        %v235 = vunpack.c.l.b16 %v207
        %v236 = vunpack.c.l.b16 %v208
        %v237 = vunpack.c.l.b16 %v209
        %v238 = vunpack.c.l.b16 %v210
        %v239 = vpack.c.b16 %v232, %v231
        %v240 = vpack.c.b16 %v234, %v233
        %v241 = vpack.c.b16 %v236, %v235
        %v242 = vpack.c.b16 %v238, %v237
        %v248 = vunpack.c.l.b16 %v211
        %v249 = vunpack.c.l.b16 %v212
        %v250 = vunpack.c.l.b16 %v213
        %v251 = vunpack.c.l.b16 %v214
        %v252 = vunpack.c.l.b16 %v215
        %v253 = vpack.c.b16 %v249, %v248
        %v254 = vpack.c.b16 %v251, %v250
        %v255 = vpack.c.b16 %v252, %v252
        %vm258 = vcmask 293888
        %v260 = vsel %vm258, %v239, 0
        %v263 = vsel %vm258, %v240, 0
        %v266 = vsel %vm258, %v241, 0
        %v269 = vsel %vm258, %v242, 0
        %vm271 = vcmask 1041408
        %v273 = vsel %vm271, %v255, 0
        %275 = vmatprep.subr.bf16.mxu0 0
        %276 = vmatpush1.bf16.msra.mxu0 %v253
        %277 = vmatprep.subr.bf16.mxu0 0
        %278 = vmatpush1.bf16.msra.mxu0 %v254
        %279 = vmatprep.subr.bf16.mxu0 0
        %280 = vmatpush1.bf16.msra.mxu0 %v273
        %281 = vmatprep.subr.bf16.mxu0 0
        %282 = vmatpush1.bf16.msra.mxu0 0
        %283 = vmatprep.subr.bf16.mxu0 0
        %284 = vmatpush1.bf16.msra.mxu0 0
        %285 = vmatprep.subr.bf16.mxu0 0
        %286 = vmatpush1.bf16.msra.mxu0 0
        %287 = vmatprep.subr.bf16.mxu0 0
        %288 = vmatpush1.bf16.msra.mxu0 0
        %289 = vmatprep.subr.bf16.mxu0 0
        %290 = vmatpush1.bf16.msra.mxu0 0
        %291 = vmatprep.subr.bf16.mxu0 0
        %292 = vmatpush1.bf16.msra.mxu0 0
        %293 = vmatprep.subr.bf16.mxu0 0
        %294 = vmatpush1.bf16.msra.mxu0 0
        %295 = vmatprep.subr.bf16.mxu0 0
        %296 = vmatpush1.bf16.msra.mxu0 0
        %297 = vmatprep.subr.bf16.mxu0 0
        %298 = vmatpush1.bf16.msra.mxu0 0
        %299 = vmatprep.subr.bf16.mxu0 0
        %300 = vmatpush1.bf16.msra.mxu0 0
        %301 = vmatprep.subr.bf16.mxu0 0
        %302 = vmatpush1.bf16.msra.mxu0 0
        %303 = vmatprep.subr.bf16.mxu0 0
        %304 = vmatpush1.bf16.msra.mxu0 0
        %305 = vmatprep.subr.bf16.mxu0 0
        %306 = vmatpush1.bf16.msra.mxu0 0
        %307 = vmatprep.mubr.bf16.mxu0 0
        %308 = vmatmul.mubr.bf16.gmra.mrb[0].mxu0 %v260
        %v309 = vpop.f32.mrb[0].mxu0
        %v310 = vadd.f32 %v221, %v309
        %v311 = vpop.f32.mrb[0].mxu0
        %v312 = vpop.f32.mrb[0].mxu0
        %v313 = vadd.f32 %v221, %v312
        %v314 = vpop.f32.mrb[0].mxu0
        %315 = vmatprep.mubr.bf16.mxu0 0
        %316 = vmatmul.mubr.bf16.gmra.mrb[0].mxu0 %v263
        %v317 = vpop.f32.mrb[0].mxu0
        %v318 = vadd.f32 %v221, %v317
        %v319 = vpop.f32.mrb[0].mxu0
        %v320 = vpop.f32.mrb[0].mxu0
        %v321 = vadd.f32 %v221, %v320
        %v322 = vpop.f32.mrb[0].mxu0
        %323 = vmatprep.mubr.bf16.mxu0 0
        %324 = vmatmul.mubr.bf16.gmra.mrb[0].mxu0 %v266
        %v325 = vpop.f32.mrb[0].mxu0
        %v326 = vadd.f32 %v221, %v325
        %v327 = vpop.f32.mrb[0].mxu0
        %v328 = vpop.f32.mrb[0].mxu0
        %v329 = vadd.f32 %v221, %v328
        %v330 = vpop.f32.mrb[0].mxu0
        %331 = vmatprep.mubr.bf16.mxu0 0
        %332 = vmatmul.mubr.bf16.gmra.mrb[0].mxu0 %v269
        %v333 = vpop.f32.mrb[0].mxu0
        %v334 = vadd.f32 %v221, %v333
        %v335 = vpop.f32.mrb[0].mxu0
        %v336 = vpop.f32.mrb[0].mxu0
        %v337 = vadd.f32 %v221, %v336
        %v338 = vpop.f32.mrb[0].mxu0
        %339 = vdwg.mxu0
        %v340 = vxor.u32 %v310, 2147483648
        %v341 = vxor.u32 %v313, 2147483648
        %v342 = vxor.u32 %v318, 2147483648
        %v343 = vxor.u32 %v321, 2147483648
        %v344 = vxor.u32 %v326, 2147483648
        %v345 = vxor.u32 %v329, 2147483648
        %v346 = vxor.u32 %v334, 2147483648
        %v347 = vxor.u32 %v337, 2147483648
        %v348 = vmul.f32 %v340, 1.442695
        %v349 = vpow.pop %v348
        %v350 = vmul.f32 %v341, 1.442695
        %v351 = vpow.pop %v350
        %v352 = vmul.f32 %v342, 1.442695
        %v353 = vpow.pop %v352
        %v354 = vmul.f32 %v343, 1.442695
        %v355 = vpow.pop %v354
        %v356 = vmul.f32 %v344, 1.442695
        %v357 = vpow.pop %v356
        %v358 = vmul.f32 %v345, 1.442695
        %v359 = vpow.pop %v358
        %v360 = vmul.f32 %v346, 1.442695
        %v361 = vpow.pop %v360
        %v362 = vmul.f32 %v347, 1.442695
        %v363 = vpow.pop %v362
        %v364 = vadd.f32 %v349, 1.0
        %v365 = vadd.f32 %v351, 1.0
        %v366 = vadd.f32 %v353, 1.0
        %v367 = vadd.f32 %v355, 1.0
        %v368 = vadd.f32 %v357, 1.0
        %v369 = vadd.f32 %v359, 1.0
        %v370 = vadd.f32 %v361, 1.0
        %v371 = vadd.f32 %v363, 1.0
        %v372 = vrcp.pop %v364
        %v373 = vmul.f32 1.0, %v372
        %v374 = vrcp.pop %v365
        %v375 = vmul.f32 1.0, %v374
        %v376 = vrcp.pop %v366
        %v377 = vmul.f32 1.0, %v376
        %v378 = vrcp.pop %v367
        %v379 = vmul.f32 1.0, %v378
        %v380 = vrcp.pop %v368
        %v381 = vmul.f32 1.0, %v380
        %v382 = vrcp.pop %v369
        %v383 = vmul.f32 1.0, %v382
        %v384 = vrcp.pop %v370
        %v385 = vmul.f32 1.0, %v384
        %v386 = vrcp.pop %v371
        %v387 = vmul.f32 1.0, %v386
        %v388 = vmul.f32 %v310, %v373
        %v389 = vmul.f32 %v313, %v375
        %v390 = vmul.f32 %v318, %v377
        %v391 = vmul.f32 %v321, %v379
        %v392 = vmul.f32 %v326, %v381
        %v393 = vmul.f32 %v329, %v383
        %v394 = vmul.f32 %v334, %v385
        %v395 = vmul.f32 %v337, %v387
        %p396 = scmp.lt.s32.totalorder %s22, 0
        // Predicated region
        $region37: #{tpu_custom_call.1} parent=31 // pred_check
          %p397 = pneg %p396
        $region38: #{tpu_custom_call.1} parent=31 // pred_check_branch
          %399 = sbr.rel (%p397) target = $region40
        $region39: #{tpu_custom_call.1} parent=31 // pred_region
          %v400 = vld [vmem:[#allocation2] sm:$0xff]
          %v401 = vadd.f32 %v388, %v389
          %v402 = vadd.f32 %v401, %v390
          %v403 = vadd.f32 %v402, %v391
          %v404 = vadd.f32 %v403, %v392
          %v405 = vadd.f32 %v404, %v393
          %v406 = vadd.f32 %v405, %v394
          %v407 = vadd.f32 %v406, %v395
          %v408 = vadd.f32 %v400, %v407
          %409 = vst [vmem:[#allocation2] sm:$0xff] %v408
        $region40: #{tpu_custom_call.1} parent=31 // pred_fallthru
          _
        // Predicated region
        $region41: #{tpu_custom_call.1} parent=31 // pred_check
          %p410 = pneg %p198
        $region42: #{tpu_custom_call.1} parent=31 // pred_check_branch
          %412 = sbr.rel (%p410) target = $region44
        $region43: #{tpu_custom_call.1} parent=31 // pred_region
          %s413 = smul.u32 %s22, 64
          %v414 = vlaneseq
          %v415 = vshrl.u32 %v414, 7
          %v416 = vadd.s32 %v415, 8
          %v417 = vadd.s32 %v415, 16
          %v418 = vadd.s32 %v415, 24
          %v419 = vadd.s32 %v415, 32
          %v420 = vadd.s32 %v415, 40
          %v421 = vadd.s32 %v415, 48
          %v422 = vadd.s32 %v415, 56
          %v423 = vstv %s413
          %v424 = vadd.s32 %v423, %v415
          %v425 = vadd.s32 %v423, %v416
          %v426 = vadd.s32 %v423, %v417
          %v427 = vadd.s32 %v423, %v418
          %v428 = vadd.s32 %v423, %v419
          %v429 = vadd.s32 %v423, %v420
          %v430 = vadd.s32 %v423, %v421
          %v431 = vadd.s32 %v423, %v422
          %vm432 = vcmp.lt.s32.totalorder %v424, 64
          %vm433 = vcmp.lt.s32.totalorder %v425, 64
          %vm434 = vcmp.lt.s32.totalorder %v426, 64
          %vm435 = vcmp.lt.s32.totalorder %v427, 64
          %vm436 = vcmp.lt.s32.totalorder %v428, 64
          %vm437 = vcmp.lt.s32.totalorder %v429, 64
          %vm438 = vcmp.lt.s32.totalorder %v430, 64
          %vm439 = vcmp.lt.s32.totalorder %v431, 64
          %v440 = vsel %vm432, 1, 0
          %v441 = vsel %vm433, 1, 0
          %v442 = vsel %vm434, 1, 0
          %v443 = vsel %vm435, 1, 0
          %v444 = vsel %vm436, 1, 0
          %v445 = vsel %vm437, 1, 0
          %v446 = vsel %vm438, 1, 0
          %v447 = vsel %vm439, 1, 0
          %vm448 = vcmp.eq.s32.totalorder %v440, 1
          %vm449 = vcmp.eq.s32.totalorder %v441, 1
          %vm450 = vcmp.eq.s32.totalorder %v442, 1
          %vm451 = vcmp.eq.s32.totalorder %v443, 1
          %vm452 = vcmp.eq.s32.totalorder %v444, 1
          %vm453 = vcmp.eq.s32.totalorder %v445, 1
          %vm454 = vcmp.eq.s32.totalorder %v446, 1
          %vm455 = vcmp.eq.s32.totalorder %v447, 1
          %v456 = vsel %vm448, %v388, 0.0
          %v457 = vsel %vm449, %v389, 0.0
          %v458 = vsel %vm450, %v390, 0.0
          %v459 = vsel %vm451, %v391, 0.0
          %v460 = vsel %vm452, %v392, 0.0
          %v461 = vsel %vm453, %v393, 0.0
          %v462 = vsel %vm454, %v394, 0.0
          %v463 = vsel %vm455, %v395, 0.0
          %v464 = vld [vmem:[#allocation2] sm:$0xff]
          %v465 = vadd.f32 %v456, %v457
          %v466 = vadd.f32 %v465, %v458
          %v467 = vadd.f32 %v466, %v459
          %v468 = vadd.f32 %v467, %v460
          %v469 = vadd.f32 %v468, %v461
          %v470 = vadd.f32 %v469, %v462
          %v471 = vadd.f32 %v470, %v463
          %v472 = vadd.f32 %v464, %v471
          %473 = vst [vmem:[#allocation2] sm:$0xff] %v472
          %v474 = vld [vmem:[#allocation2] sm:$0xff]
          %v475 = vmul.f32 %v474, 0.015625
          %476 = vst [vmem:[%s186] sm:$0xff] %v475
        $region44: #{tpu_custom_call.1} parent=31 // pred_fallthru
          _
        %s477 = sand.u32 %s107, 1
        %s478 = scalar_lea.sflag [#allocation4], %s477
        %s479 = sand.u32 %s107, 1
        %s480 = smul.addr %s479, 8
        %s481 = scalar_lea.vmem [#allocation3], %s480
        // Predicated region
        $region45: #{tpu_custom_call.1} parent=31 // pred_check
          %p482 = pneg %p117
        $region46: #{tpu_custom_call.1} parent=31 // pred_check_branch
          %484 = sbr.rel (%p482) target = $region48
        $region47: #{tpu_custom_call.1} parent=31 // pred_region
          %s486 = ssub.s32 128, 128
          %487 = vsyncadd %s478, %s486
          %s488 = smul.addr %s21, 128
          %s489 = scalar_lea.hbm %s3, %s488
          %s491 = sshll.u32 %s481, 4
          %s492 = int_to_ptr.vmem [resolvable:$true] %s491
          %494 = dma.vmem_to_hbm [thread:$0]  %s492, 128, %s489, %s478
        $region48: #{tpu_custom_call.1} parent=31 // pred_fallthru
          _
      $region32: #{tpu_custom_call.1} parent=5 // pred_fallthru
        _
      %p495 = scmp.le.s32.totalorder 2, %s12
      // Predicated region
      $region49: #{tpu_custom_call.1} parent=5 // pred_check
        %p496 = pneg %p495
      $region50: #{tpu_custom_call.1} parent=5 // pred_check_branch
        %498 = sbr.rel (%p496) target = $region52
      $region51: #{tpu_custom_call.1} parent=5 // pred_region
        %s499 = ssub.s32 %s12, 2
        // Predicated region
        $region53: #{tpu_custom_call.1} parent=51 // pred_check
          %p500 = pneg %p123
        $region54: #{tpu_custom_call.1} parent=51 // pred_check_branch
          %502 = sbr.rel (%p500) target = $region56
        $region55: #{tpu_custom_call.1} parent=51 // pred_region
          %s503 = sand.u32 %s108, 1
          %s504 = scalar_lea.sflag [#allocation4], %s503
          %s505 = sand.u32 %s108, 1
          %s506 = smul.addr %s505, 8
          %s507 = scalar_lea.vmem [#allocation3], %s506
          %508 = dma.done %s504, 128
        $region56: #{tpu_custom_call.1} parent=51 // pred_fallthru
          _
      $region52: #{tpu_custom_call.1} parent=5 // pred_fallthru
        _
    $region6: #{tpu_custom_call.1} parent=1 // loop_footer
      %s16 = sadd.s32 1, %s12
    $region7: #{tpu_custom_call.1} parent=1 // loop_footer_branch
      %11 = sbr.rel target = $region3
    $region8: #{tpu_custom_call.1} parent=1 // loop_exit
      _
    %509 = vsyncpa [#allocation4], 1
    %s510 = scalar_lea.sflag [#allocation4], 1
    %511 = vsyncpa %s510, 1

</llo_original>
